<compile_context>
chip_gen: v6e
topology: v6e:2x2x1
jax: 0.10.0
libtpu: 0.0.40
codegen_flags: <defaults>
</compile_context>

<pallas_src>
from functools import partial

import jax
import jax.numpy as jnp
from jax.experimental import pallas as pl
from jax.experimental.pallas import tpu as pltpu


_VMEM_LIMIT_BYTES = 32 * 1024 * 1024      # explicit scoped-VMEM limit (all gens)
_VMEM_BUFFER_BUDGET = 16 * 1024 * 1024    # target for double-buffered blocks


def _padded_plane_bytes(sub, lane, itemsize):
    """VMEM bytes of one (sub, lane) tile after (8, 128) layout padding."""
    sub_p = -(-sub // 8) * 8
    lane_p = -(-lane // 128) * 128
    return sub_p * lane_p * itemsize


def _choose_plane_batch(n_planes, per_plane_bytes, budget_bytes):
    """Largest divisor of n_planes whose double-buffered block fits the budget,
    preferring an even number of grid steps (v7x has 2 TensorCores/chip)."""
    max_p = max(1, budget_bytes // max(1, 2 * per_plane_bytes))
    divisors = [d for d in range(1, n_planes + 1) if n_planes % d == 0]
    fitting = [d for d in divisors if d <= max_p] or [1]
    even_grid = [d for d in fitting if (n_planes // d) % 2 == 0]
    return max(even_grid) if even_grid else max(fitting)


# ---------------------------------------------------------------------------
# Fused kernel: LeakyReLU(0.2) + InstanceNorm + affine (gamma+1, beta).
#   x_ref : (P, hs, factor*W)  -- each "grouped row" holds `factor` image rows
#   g_ref : (P, hs, W)         -- gamma, already repeated along W (low-res in H)
#   b_ref : (P, hs, W)         -- beta,  already repeated along W (low-res in H)
# ---------------------------------------------------------------------------
def _patchnorm_kernel(x_ref, g_ref, b_ref, o_ref, *, eps, factor):
    x = x_ref[...].astype(jnp.float32)                  # (P, hs, factor*W)
    x = jnp.where(x >= 0, x, 0.2 * x)                   # LeakyReLU(0.2)

    inv_n = 1.0 / (x.shape[1] * x.shape[2])             # 1/(H*W), static
    mu = jnp.sum(jnp.sum(x, axis=2, keepdims=True), axis=1, keepdims=True) * inv_n
    xc = x - mu                                          # two-pass, matches torch
    var = jnp.sum(jnp.sum(xc * xc, axis=2, keepdims=True),
                  axis=1, keepdims=True) * inv_n
    xn = xc * jax.lax.rsqrt(var + eps)                  # InstanceNorm (EUP rsqrt)

    g = g_ref[...].astype(jnp.float32)                  # (P, hs, W)
    b = b_ref[...].astype(jnp.float32)
    if factor > 1:
        # H-direction nearest-neighbour replication, done in VMEM: the
        # `factor` image rows packed into one grouped row all share the same
        # gamma/beta row, so tiling along lanes reproduces the full-resolution
        # modulation pattern without ever materializing it in HBM.
        g = jnp.concatenate([g] * factor, axis=-1)      # (P, hs, factor*W)
        b = jnp.concatenate([b] * factor, axis=-1)

    o_ref[...] = (xn * (g + 1.0) + b).astype(o_ref.dtype)


def patch_norm_forward(x, style, w, bias, factor, eps=1e-8):
    """PatchNorm.forward(x, style, norm='InstanceNorm') with bias=True."""
    B, C, H, W = x.shape
    _, Cin, hs, ws = style.shape
    Cout2 = w.shape[0]
    Cout = Cout2 // 2
    assert C == Cout, "x channels must equal out_channels"
    assert hs * factor == H, "style height * factor must equal x height"

    # ---- tiny 1x1 conv on style: left to XLA (negligible FLOPs) ----
    w2 = w[:, :, 0, 0].astype(jnp.float32)                        # [2*Cout, Cin]
    bg = jnp.einsum('bchw,oc->bohw', style.astype(jnp.float32), w2)
    bg = bg + bias.astype(jnp.float32)[None, :, None, None]       # [B, 2C, hs, ws]
    beta_lo, gamma_lo = bg[:, :Cout], bg[:, Cout:]                 # torch .chunk(2, 1)

    # ---- W-direction nearest-neighbour repeat (only 1/factor of full size;
    #      the H-direction replication happens inside the kernel) ----
    beta_w = jnp.repeat(beta_lo, factor, axis=3)                   # [B, C, hs, ws*factor]
    gamma_w = jnp.repeat(gamma_lo, factor, axis=3)
    if gamma_w.shape[3] > W:                                       # torch tile_cut branch
        cut = (gamma_w.shape[3] - W) // 2
        beta_w = beta_w[..., cut:W + cut]
        gamma_w = gamma_w[..., cut:W + cut]
    assert gamma_w.shape[3] == W, "tiled gamma width must match x width"

    # ---- lane-dense grouped-row views (pure row-major reshapes, no copies of x) ----
    n_planes = B * C
    fw = factor * W
    xg = x.reshape(n_planes, hs, fw)
    gw = gamma_w.reshape(n_planes, hs, W)
    bw = beta_w.reshape(n_planes, hs, W)

    # ---- plane batching under the VMEM budget ----
    itemsize = jnp.dtype(x.dtype).itemsize
    per_plane = (2 * _padded_plane_bytes(hs, fw, itemsize)         # x in + out
                 + 2 * _padded_plane_bytes(hs, W, 4))              # gamma + beta (f32)
    # TODO(synk): for single planes larger than the VMEM budget (very large H*W),
    # add spatial tiling with sum/sumsq accumulators and a pl.when finalize pass.
    P = _choose_plane_batch(n_planes, per_plane, _VMEM_BUFFER_BUDGET)
    grid = (n_planes // P,)

    plane_spec = pl.BlockSpec((P, hs, fw), lambda i: (i, 0, 0))
    gb_spec = pl.BlockSpec((P, hs, W), lambda i: (i, 0, 0))

    out = pl.pallas_call(
        partial(_patchnorm_kernel, eps=eps, factor=factor),
        out_shape=jax.ShapeDtypeStruct((n_planes, hs, fw), x.dtype),
        grid=grid,
        in_specs=[plane_spec, gb_spec, gb_spec],
        out_specs=plane_spec,
        compiler_params=pltpu.CompilerParams(
            dimension_semantics=("parallel",),
            vmem_limit_bytes=_VMEM_LIMIT_BYTES),
    )(xg, gw, bw)
    return out.reshape(B, C, H, W)


# ---------------------------------------------------------------------------
# Pure-JAX reference (mirrors the PyTorch forward exactly)
# ---------------------------------------------------------------------------
def patch_norm_reference(x, style, w, bias, factor, eps=1e-8):
    act = jnp.where(x >= 0, x, 0.2 * x)
    bg = jnp.einsum('bchw,oc->bohw', style, w[:, :, 0, 0]) \
        + bias[None, :, None, None]
    Cout = bg.shape[1] // 2
    beta, gamma = bg[:, :Cout], bg[:, Cout:]
    beta = jnp.repeat(jnp.repeat(beta, factor, axis=2), factor, axis=3)
    gamma = jnp.repeat(jnp.repeat(gamma, factor, axis=2), factor, axis=3)
    if gamma.shape[3] > x.shape[3]:
        cut = (gamma.shape[3] - x.shape[3]) // 2
        beta = beta[:, :, :, cut:x.shape[3] + cut]
        gamma = gamma[:, :, :, cut:x.shape[3] + cut]
    mu = jnp.mean(act, axis=(2, 3), keepdims=True)
    xc = act - mu
    var = jnp.mean(xc * xc, axis=(2, 3), keepdims=True)
    xn = xc * jax.lax.rsqrt(var + eps)
    return xn * (gamma + 1.0) + beta


if __name__ == "__main__":
    # Shapes consistent with the module: in_channels=8, out_channels=4,
    # factor=8 -> style spatial = 16/8 = 2.
    B, Cin, Cout, factor = 2, 8, 4, 8
    H = W = 16

    key = jax.random.PRNGKey(0)
    kx, ks, kw, kb = jax.random.split(key, 4)
    x = jax.random.normal(kx, (B, Cout, H, W), dtype=jnp.float32)
    style = jax.random.normal(ks, (B, Cin, H // factor, W // factor),
                              dtype=jnp.float32)
    w = jax.random.normal(kw, (2 * Cout, Cin, 1, 1), dtype=jnp.float32) * 0.1
    bias = jax.random.normal(kb, (2 * Cout,), dtype=jnp.float32) * 0.1

    fwd = jax.jit(lambda xx, ss, ww, bb: patch_norm_forward(xx, ss, ww, bb, factor))
    out = fwd(x, style, w, bias)
    out = jax.block_until_ready(out)

    ref = patch_norm_reference(x, style, w, bias, factor)
    assert out.shape == (B, Cout, H, W)
    err = jnp.max(jnp.abs(out - ref))
    assert jnp.allclose(out, ref, rtol=1e-5, atol=1e-5), f"max err {err}"

    print("KERNEL_OK")
</pallas_src>

<mosaic_0001>
module attributes {stable_mosaic.version = 11 : i64} {
  func.func @_patchnorm_kernel(%arg0: i32, %arg1: memref<4x2x128xf32, #tpu.memory_space<vmem>>, %arg2: memref<4x2x16xf32, #tpu.memory_space<vmem>>, %arg3: memref<4x2x16xf32, #tpu.memory_space<vmem>>, %arg4: memref<4x2x128xf32, #tpu.memory_space<vmem>>) attributes {dimension_semantics = [#tpu.dimension_semantics<parallel>], iteration_bounds = array<i64: 2>, scalar_prefetch = 0 : i64, scratch_operands = 0 : i64, tpu.core_type = #tpu.core_type<tc>, window_params = [{transform_indices = @transform_0, window_bounds = array<i64: 4, 2, 128>}, {transform_indices = @transform_1, window_bounds = array<i64: 4, 2, 16>}, {transform_indices = @transform_2, window_bounds = array<i64: 4, 2, 16>}, {transform_indices = @transform_3, window_bounds = array<i64: 4, 2, 128>}]} {
    %c0 = arith.constant 0 : index
    %c0_0 = arith.constant 0 : index
    %c0_1 = arith.constant 0 : index
    %0 = vector.load %arg1[%c0, %c0_0, %c0_1] : memref<4x2x128xf32, #tpu.memory_space<vmem>>, vector<4x2x128xf32>
    %cst = arith.constant 0.000000e+00 : f32
    %1 = vector.broadcast %cst : f32 to vector<4x2x128xf32>
    %2 = arith.cmpf oge, %0, %1 : vector<4x2x128xf32>
    %cst_2 = arith.constant 2.000000e-01 : f32
    %3 = vector.broadcast %cst_2 : f32 to vector<4x2x128xf32>
    %4 = arith.mulf %3, %0 : vector<4x2x128xf32>
    %5 = arith.select %2, %0, %4 : vector<4x2x128xi1>, vector<4x2x128xf32>
    %cst_3 = arith.constant dense<0.000000e+00> : vector<4x2xf32>
    %6 = vector.multi_reduction <add>, %5, %cst_3 [2] : vector<4x2x128xf32> to vector<4x2xf32>
    %7 = vector.shape_cast %6 : vector<4x2xf32> to vector<4x2x1xf32>
    %cst_4 = arith.constant dense<0.000000e+00> : vector<4x1xf32>
    %8 = vector.multi_reduction <add>, %7, %cst_4 [1] : vector<4x2x1xf32> to vector<4x1xf32>
    %9 = vector.shape_cast %8 : vector<4x1xf32> to vector<4x1x1xf32>
    %cst_5 = arith.constant 3.906250e-03 : f32
    %10 = vector.broadcast %cst_5 : f32 to vector<4x1x1xf32>
    %11 = arith.mulf %9, %10 : vector<4x1x1xf32>
    %12 = vector.broadcast %11 : vector<4x1x1xf32> to vector<4x2x128xf32>
    %13 = arith.subf %5, %12 : vector<4x2x128xf32>
    %14 = arith.mulf %13, %13 : vector<4x2x128xf32>
    %cst_6 = arith.constant dense<0.000000e+00> : vector<4x2xf32>
    %15 = vector.multi_reduction <add>, %14, %cst_6 [2] : vector<4x2x128xf32> to vector<4x2xf32>
    %16 = vector.shape_cast %15 : vector<4x2xf32> to vector<4x2x1xf32>
    %cst_7 = arith.constant dense<0.000000e+00> : vector<4x1xf32>
    %17 = vector.multi_reduction <add>, %16, %cst_7 [1] : vector<4x2x1xf32> to vector<4x1xf32>
    %18 = vector.shape_cast %17 : vector<4x1xf32> to vector<4x1x1xf32>
    %cst_8 = arith.constant 3.906250e-03 : f32
    %19 = vector.broadcast %cst_8 : f32 to vector<4x1x1xf32>
    %20 = arith.mulf %18, %19 : vector<4x1x1xf32>
    %cst_9 = arith.constant 9.99999993E-9 : f32
    %21 = vector.broadcast %cst_9 : f32 to vector<4x1x1xf32>
    %22 = arith.addf %20, %21 : vector<4x1x1xf32>
    %23 = math.rsqrt %22 : vector<4x1x1xf32>
    %24 = vector.broadcast %23 : vector<4x1x1xf32> to vector<4x2x128xf32>
    %25 = arith.mulf %13, %24 : vector<4x2x128xf32>
    %c0_10 = arith.constant 0 : index
    %c0_11 = arith.constant 0 : index
    %c0_12 = arith.constant 0 : index
    %26 = vector.load %arg2[%c0_10, %c0_11, %c0_12] : memref<4x2x16xf32, #tpu.memory_space<vmem>>, vector<4x2x16xf32>
    %c0_13 = arith.constant 0 : index
    %c0_14 = arith.constant 0 : index
    %c0_15 = arith.constant 0 : index
    %27 = vector.load %arg3[%c0_13, %c0_14, %c0_15] : memref<4x2x16xf32, #tpu.memory_space<vmem>>, vector<4x2x16xf32>
    %28 = tpu.concatenate %26, %26, %26, %26, %26, %26, %26, %26 in 2 : vector<4x2x16xf32>, vector<4x2x16xf32>, vector<4x2x16xf32>, vector<4x2x16xf32>, vector<4x2x16xf32>, vector<4x2x16xf32>, vector<4x2x16xf32>, vector<4x2x16xf32> -> vector<4x2x128xf32>
    %29 = tpu.concatenate %27, %27, %27, %27, %27, %27, %27, %27 in 2 : vector<4x2x16xf32>, vector<4x2x16xf32>, vector<4x2x16xf32>, vector<4x2x16xf32>, vector<4x2x16xf32>, vector<4x2x16xf32>, vector<4x2x16xf32>, vector<4x2x16xf32> -> vector<4x2x128xf32>
    %cst_16 = arith.constant 1.000000e+00 : f32
    %30 = vector.broadcast %cst_16 : f32 to vector<4x2x128xf32>
    %31 = arith.addf %28, %30 : vector<4x2x128xf32>
    %32 = arith.mulf %25, %31 : vector<4x2x128xf32>
    %33 = arith.addf %32, %29 : vector<4x2x128xf32>
    %c0_17 = arith.constant 0 : index
    %c0_18 = arith.constant 0 : index
    %c0_19 = arith.constant 0 : index
    %34 = vector.load %arg4[%c0_17, %c0_18, %c0_19] : memref<4x2x128xf32, #tpu.memory_space<vmem>>, vector<4x2x128xf32>
    tpu.vector_store %arg4[%c0_17, %c0_18, %c0_19], %33 {strides = array<i32>} : memref<4x2x128xf32, #tpu.memory_space<vmem>>, vector<4x2x128xf32>,
    return
  }
  func.func @transform_0(%arg0: i32) -> (i32, i32, i32) {
    %c0_i32 = arith.constant 0 : i32
    %c0_i32_0 = arith.constant 0 : i32
    %c0_i32_1 = arith.constant 0 : i32
    return %arg0, %c0_i32, %c0_i32_0 : i32, i32, i32
  }
  func.func @transform_1(%arg0: i32) -> (i32, i32, i32) {
    %c0_i32 = arith.constant 0 : i32
    %c0_i32_0 = arith.constant 0 : i32
    %c0_i32_1 = arith.constant 0 : i32
    return %arg0, %c0_i32, %c0_i32_0 : i32, i32, i32
  }
  func.func @transform_2(%arg0: i32) -> (i32, i32, i32) {
    %c0_i32 = arith.constant 0 : i32
    %c0_i32_0 = arith.constant 0 : i32
    %c0_i32_1 = arith.constant 0 : i32
    return %arg0, %c0_i32, %c0_i32_0 : i32, i32, i32
  }
  func.func @transform_3(%arg0: i32) -> (i32, i32, i32) {
    %c0_i32 = arith.constant 0 : i32
    %c0_i32_0 = arith.constant 0 : i32
    %c0_i32_1 = arith.constant 0 : i32
    return %arg0, %c0_i32, %c0_i32_0 : i32, i32, i32
  }
}

</mosaic_0001>

<llo_original>
// kernel: _lambda_.1
$region0: #{_lambda_.1}
  #allocation0 [shape = 'u32[]', space=smem, size = 0x4, offset = 0x4, fixed_abs, tag = 'smem constant byte address 0x4 - core index']
  #allocation1 [shape = 'u32[144,128]{1,0:T(1,128)}', space=vmem, size = 0x12000, scoped, tag = 'internal scratch']
  %s0 = inlined_call_operand.vmem [shape: f32[8,2,128], index: 0, kind: input, shape index: {}]
  %s1 = inlined_call_operand.vmem [shape: f32[8,2,16], index: 1, kind: input, shape index: {}]
  %s2 = inlined_call_operand.vmem [shape: f32[8,2,16], index: 2, kind: input, shape index: {}]
  %s3 = inlined_call_operand.vmem [shape: f32[8,2,128], index: 3, kind: output, shape index: {}]
  %s4 = sld [smem:[#allocation0]]
  $region45: #{_lambda_.1} parent=0
    _
  %s6 = ssub.s32 1, %s4
  %s7 = scalar_select 0, %s6, %s4
  loop: start=0, step=1, limit=4
  $region2: #{_lambda_.1} parent=0 // loop_pre_header
    _
  $region3: #{_lambda_.1} parent=0 // loop_header
    %s9 = sphi 0, %s13
    %p10 = scmp.ge.s32.totalorder %s9, 4
    %s19 = sphi 0, %s21
    %s22 = sphi 0, %s19
    %s23 = sphi 0, %s22
    %s39 = sphi 0, %s23
    %s45 = sphi 0, %s47
    %s48 = sphi 0, %s45
    %s49 = sphi 0, %s48
    %s65 = sphi 0, %s49
    %s71 = sphi 0, %s73
    %s74 = sphi 0, %s71
    %s75 = sphi 0, %s74
    %s91 = sphi 0, %s75
    %s97 = sphi 0, %s99
    %s100 = sphi 0, %s97
    %s101 = sphi 0, %s100
    %s117 = sphi 0, %s101
  $region4: #{_lambda_.1} parent=0 // loop_header_branch
    %12 = sbr.rel (%p10) target = $region8
  $region5: #{_lambda_.1} parent=0 // loop_body
    %s14 = ssub.s32 %s9, 1
    %s15 = ssub.s32 %s9, 2
    %s16 = sadd.s32 %s9, 1
    %s17 = ssub.s32 %s9, %s16
    %p18 = scmp.eq.s32.totalorder %s17, 0
    %s20 = sadd.s32 %s19, 1
    %s21 = scalar_select %p18, %s19, %s20
    %p24 = pneg %p18
    %p25 = scmp.eq.s32.totalorder %s9, 1
    %p26 = por %p24, %p25
    %p27 = scmp.ne.s32.totalorder %s19, %s22
    %p28 = scmp.eq.s32.totalorder %s9, 0
    %p29 = por %p27, %p28
    %p30 = scmp.ne.s32.totalorder %s19, %s22
    %p31 = scmp.eq.s32.totalorder %s14, 1
    %p32 = por %p30, %p31
    %p33 = scmp.ne.s32.totalorder %s22, %s23
    %p34 = scmp.eq.s32.totalorder %s14, 0
    %p35 = por %p33, %p34
    %p36 = scmp.ne.s32.totalorder %s22, %s23
    %p37 = scmp.eq.s32.totalorder %s15, 1
    %p38 = por %p36, %p37
    %p40 = scmp.ne.s32.totalorder %s23, %s39
    %p41 = scmp.eq.s32.totalorder %s15, 0
    %p42 = por %p40, %p41
    %s43 = ssub.s32 %s9, %s16
    %p44 = scmp.eq.s32.totalorder %s43, 0
    %s46 = sadd.s32 %s45, 1
    %s47 = scalar_select %p44, %s45, %s46
    %p50 = pneg %p44
    %p51 = scmp.eq.s32.totalorder %s9, 1
    %p52 = por %p50, %p51
    %p53 = scmp.ne.s32.totalorder %s45, %s48
    %p54 = scmp.eq.s32.totalorder %s9, 0
    %p55 = por %p53, %p54
    %p56 = scmp.ne.s32.totalorder %s45, %s48
    %p57 = scmp.eq.s32.totalorder %s14, 1
    %p58 = por %p56, %p57
    %p59 = scmp.ne.s32.totalorder %s48, %s49
    %p60 = scmp.eq.s32.totalorder %s14, 0
    %p61 = por %p59, %p60
    %p62 = scmp.ne.s32.totalorder %s48, %s49
    %p63 = scmp.eq.s32.totalorder %s15, 1
    %p64 = por %p62, %p63
    %p66 = scmp.ne.s32.totalorder %s49, %s65
    %p67 = scmp.eq.s32.totalorder %s15, 0
    %p68 = por %p66, %p67
    %s69 = ssub.s32 %s9, %s16
    %p70 = scmp.eq.s32.totalorder %s69, 0
    %s72 = sadd.s32 %s71, 1
    %s73 = scalar_select %p70, %s71, %s72
    %p76 = pneg %p70
    %p77 = scmp.eq.s32.totalorder %s9, 1
    %p78 = por %p76, %p77
    %p79 = scmp.ne.s32.totalorder %s71, %s74
    %p80 = scmp.eq.s32.totalorder %s9, 0
    %p81 = por %p79, %p80
    %p82 = scmp.ne.s32.totalorder %s71, %s74
    %p83 = scmp.eq.s32.totalorder %s14, 1
    %p84 = por %p82, %p83
    %p85 = scmp.ne.s32.totalorder %s74, %s75
    %p86 = scmp.eq.s32.totalorder %s14, 0
    %p87 = por %p85, %p86
    %p88 = scmp.ne.s32.totalorder %s74, %s75
    %p89 = scmp.eq.s32.totalorder %s15, 1
    %p90 = por %p88, %p89
    %p92 = scmp.ne.s32.totalorder %s75, %s91
    %p93 = scmp.eq.s32.totalorder %s15, 0
    %p94 = por %p92, %p93
    %s95 = ssub.s32 %s9, %s16
    %p96 = scmp.eq.s32.totalorder %s95, 0
    %s98 = sadd.s32 %s97, 1
    %s99 = scalar_select %p96, %s97, %s98
    %p102 = pneg %p96
    %p103 = scmp.eq.s32.totalorder %s9, 1
    %p104 = por %p102, %p103
    %p105 = scmp.ne.s32.totalorder %s97, %s100
    %p106 = scmp.eq.s32.totalorder %s9, 0
    %p107 = por %p105, %p106
    %p108 = scmp.ne.s32.totalorder %s97, %s100
    %p109 = scmp.eq.s32.totalorder %s14, 1
    %p110 = por %p108, %p109
    %p111 = scmp.ne.s32.totalorder %s100, %s101
    %p112 = scmp.eq.s32.totalorder %s14, 0
    %p113 = por %p111, %p112
    %p114 = scmp.ne.s32.totalorder %s100, %s101
    %p115 = scmp.eq.s32.totalorder %s15, 1
    %p116 = por %p114, %p115
    %p118 = scmp.ne.s32.totalorder %s101, %s117
    %p119 = scmp.eq.s32.totalorder %s15, 0
    %p120 = por %p118, %p119
    %p121 = scmp.le.s32.totalorder 1, %s9
    %p122 = scmp.lt.s32.totalorder %s9, 3
    %p123 = pnand %p121, %p122
    %p124 = pneg %p123
    // Predicated region
    $region9: #{_lambda_.1} parent=5 // pred_check
      _
    $region10: #{_lambda_.1} parent=5 // pred_check_branch
      %126 = sbr.rel (%p123) target = $region12
    $region11: #{_lambda_.1} parent=5 // pred_region
      %s127 = ssub.s32 %s9, 1
    $region12: #{_lambda_.1} parent=5 // pred_fallthru
      _
    %p128 = scmp.lt.s32.totalorder %s9, 2
    // Predicated region
    $region13: #{_lambda_.1} parent=5 // pred_check
      %p129 = pneg %p128
    $region14: #{_lambda_.1} parent=5 // pred_check_branch
      %131 = sbr.rel (%p129) target = $region16
    $region15: #{_lambda_.1} parent=5 // pred_region
      // Predicated region
      $region17: #{_lambda_.1} parent=15 // pred_check
        %p132 = pneg %p29
      $region18: #{_lambda_.1} parent=15 // pred_check_branch
        %134 = sbr.rel (%p132) target = $region20
      $region19: #{_lambda_.1} parent=15 // pred_region
        %s135 = smul.u32 4, %s9
        %p136 = scmp.lt.s32.totalorder %s135, 7
        %s137 = scalar_select %p136, %s135, 7
        %s138 = smul.addr %s137, 2
        %s139 = scalar_lea.vmem %s0, %s138
        %s140 = smul.u32 4, %s9
      $region20: #{_lambda_.1} parent=15 // pred_fallthru
        _
      // Predicated region
      $region21: #{_lambda_.1} parent=15 // pred_check
        %p141 = pneg %p55
      $region22: #{_lambda_.1} parent=15 // pred_check_branch
        %143 = sbr.rel (%p141) target = $region24
      $region23: #{_lambda_.1} parent=15 // pred_region
        %s144 = smul.u32 4, %s9
        %p145 = scmp.lt.s32.totalorder %s144, 7
        %s146 = scalar_select %p145, %s144, 7
        %s147 = smul.addr %s146, 2
        %s148 = scalar_lea.vmem %s1, %s147
        %s149 = smul.u32 4, %s9
      $region24: #{_lambda_.1} parent=15 // pred_fallthru
        _
      // Predicated region
      $region25: #{_lambda_.1} parent=15 // pred_check
        %p150 = pneg %p81
      $region26: #{_lambda_.1} parent=15 // pred_check_branch
        %152 = sbr.rel (%p150) target = $region28
      $region27: #{_lambda_.1} parent=15 // pred_region
        %s153 = smul.u32 4, %s9
        %p154 = scmp.lt.s32.totalorder %s153, 7
        %s155 = scalar_select %p154, %s153, 7
        %s156 = smul.addr %s155, 2
        %s157 = scalar_lea.vmem %s2, %s156
        %s158 = smul.u32 4, %s9
      $region28: #{_lambda_.1} parent=15 // pred_fallthru
        _
    $region16: #{_lambda_.1} parent=5 // pred_fallthru
      _
    %p159 = scmp.le.s32.totalorder 1, %s9
    %p160 = scmp.lt.s32.totalorder %s9, 3
    %p161 = pnand %p159, %p160
    %p162 = pneg %p161
    // Predicated region
    $region29: #{_lambda_.1} parent=5 // pred_check
      _
    $region30: #{_lambda_.1} parent=5 // pred_check_branch
      %164 = sbr.rel (%p161) target = $region32
    $region31: #{_lambda_.1} parent=5 // pred_region
      %s165 = ssub.s32 %s9, 1
      %s166 = smul.u32 4, %s14
      %p167 = scmp.lt.s32.totalorder %s166, 7
      %s168 = scalar_select %p167, %s166, 7
      %s169 = smul.addr %s168, 2
      %s170 = scalar_lea.vmem %s0, %s169
      %p171 = pneg %p35
      %p172 = pneg %p32
      %s173 = smul.u32 4, %s14
      %p174 = scmp.lt.s32.totalorder %s173, 7
      %s175 = scalar_select %p174, %s173, 7
      %s176 = smul.addr %s175, 2
      %s177 = scalar_lea.vmem %s1, %s176
      %p178 = pneg %p61
      %p179 = pneg %p58
      %s180 = smul.u32 4, %s14
      %p181 = scmp.lt.s32.totalorder %s180, 7
      %s182 = scalar_select %p181, %s180, 7
      %s183 = smul.addr %s182, 2
      %s184 = scalar_lea.vmem %s2, %s183
      %p185 = pneg %p87
      %p186 = pneg %p84
      %p187 = pneg %p113
      %p188 = pneg %p110
      %s189 = smul.u32 4, %s14
      %p190 = scmp.lt.s32.totalorder %s189, 7
      %s191 = scalar_select %p190, %s189, 7
      %s192 = smul.addr %s191, 2
      %s193 = scalar_lea.vmem %s3, %s192
      %s194 = smul.u32 4, %s14
      %p195 = scmp.lt.s32.totalorder %s194, 7
      %s196 = scalar_select %p195, %s194, 7
      %s197 = smul.addr %s196, 2
      %s198 = scalar_lea.vmem %s0, %s197
      %s199 = smul.u32 4, %s14
      %s200 = smul.u32 4, %s14
      %p201 = scmp.lt.s32.totalorder %s200, 7
      %s202 = scalar_select %p201, %s200, 7
      %s203 = smul.addr %s202, 2
      %s204 = scalar_lea.vmem %s1, %s203
      %s205 = smul.u32 4, %s14
      %s206 = smul.u32 4, %s14
      %p207 = scmp.lt.s32.totalorder %s206, 7
      %s208 = scalar_select %p207, %s206, 7
      %s209 = smul.addr %s208, 2
      %s210 = scalar_lea.vmem %s2, %s209
      %s211 = smul.u32 4, %s14
      %s212 = smul.u32 4, %s14
      %p213 = scmp.lt.s32.totalorder %s212, 7
      %s214 = scalar_select %p213, %s212, 7
      %s215 = smul.addr %s214, 2
      %s216 = scalar_lea.vmem %s3, %s215
      %s217 = smul.u32 4, %s14
      %v218 = vld [vmem:[%s198] sm:$0x3]
      %v219 = vld [vmem:[%s198 + $0x2] sm:$0x3]
      %v220 = vld [vmem:[%s198 + $0x4] sm:$0x3]
      %v221 = vld [vmem:[%s198 + $0x6] sm:$0x3]
      %vm222 = vcmp.ge.f32.partialorder %v218, 0.0
      %vm223 = vcmp.ge.f32.partialorder %v219, 0.0
      %vm224 = vcmp.ge.f32.partialorder %v220, 0.0
      %vm225 = vcmp.ge.f32.partialorder %v221, 0.0
      %v226 = vmul.f32 %v218, 0.2
      %v227 = vmul.f32 %v219, 0.2
      %v228 = vmul.f32 %v220, 0.2
      %v229 = vmul.f32 %v221, 0.2
      %v230 = vsel %vm222, %v218, %v226
      %v231 = vsel %vm223, %v219, %v227
      %v232 = vsel %vm224, %v220, %v228
      %v233 = vsel %vm225, %v221, %v229
      %vm234 = vcmask 1041408
      %v235 = vsel %vm234, %v230, 0.0
      %236 = vadd.xlane.f32.xlu0 %v235
      %v237 = vpop.xlane.xlu0 %236
      %v238 = vsel %vm234, %v231, 0.0
      %239 = vadd.xlane.f32.xlu0 %v238
      %v240 = vpop.xlane.xlu0 %239
      %v241 = vsel %vm234, %v232, 0.0
      %242 = vadd.xlane.f32.xlu0 %v241
      %v243 = vpop.xlane.xlu0 %242
      %v244 = vsel %vm234, %v233, 0.0
      %245 = vadd.xlane.f32.xlu0 %v244
      %v246 = vpop.xlane.xlu0 %245
      %v247 = vsel %vm234, %v237, 0.0
      %v248 = vrot.slane %v247, 4
      %v249 = vadd.f32 %v247, %v248
      %v250 = vrot.slane %v249, 2
      %v251 = vadd.f32 %v249, %v250
      %v252 = vrot.slane %v251, 1
      %v253 = vadd.f32 %v251, %v252
      %v254 = vsel %vm234, %v240, 0.0
      %v255 = vrot.slane %v254, 4
      %v256 = vadd.f32 %v254, %v255
      %v257 = vrot.slane %v256, 2
      %v258 = vadd.f32 %v256, %v257
      %v259 = vrot.slane %v258, 1
      %v260 = vadd.f32 %v258, %v259
      %v261 = vsel %vm234, %v243, 0.0
      %v262 = vrot.slane %v261, 4
      %v263 = vadd.f32 %v261, %v262
      %v264 = vrot.slane %v263, 2
      %v265 = vadd.f32 %v263, %v264
      %v266 = vrot.slane %v265, 1
      %v267 = vadd.f32 %v265, %v266
      %v268 = vsel %vm234, %v246, 0.0
      %v269 = vrot.slane %v268, 4
      %v270 = vadd.f32 %v268, %v269
      %v271 = vrot.slane %v270, 2
      %v272 = vadd.f32 %v270, %v271
      %v273 = vrot.slane %v272, 1
      %v274 = vadd.f32 %v272, %v273
      %v275 = vmul.f32 %v253, 0.00390625
      %v276 = vmul.f32 %v260, 0.00390625
      %v277 = vmul.f32 %v267, 0.00390625
      %v278 = vmul.f32 %v274, 0.00390625
      %v279 = vsub.f32 %v230, %v275
      %v280 = vsub.f32 %v231, %v276
      %v281 = vsub.f32 %v232, %v277
      %v282 = vsub.f32 %v233, %v278
      %v283 = vmul.f32 %v279, %v279
      %v284 = vmul.f32 %v280, %v280
      %v285 = vmul.f32 %v281, %v281
      %v286 = vmul.f32 %v282, %v282
      %v287 = vsel %vm234, %v283, 0.0
      %288 = vadd.xlane.f32.xlu0 %v287
      %v289 = vpop.xlane.xlu0 %288
      %v290 = vsel %vm234, %v284, 0.0
      %291 = vadd.xlane.f32.xlu0 %v290
      %v292 = vpop.xlane.xlu0 %291
      %v293 = vsel %vm234, %v285, 0.0
      %294 = vadd.xlane.f32.xlu0 %v293
      %v295 = vpop.xlane.xlu0 %294
      %v296 = vsel %vm234, %v286, 0.0
      %297 = vadd.xlane.f32.xlu0 %v296
      %v298 = vpop.xlane.xlu0 %297
      %v299 = vsel %vm234, %v289, 0.0
      %v300 = vrot.slane %v299, 4
      %v301 = vadd.f32 %v299, %v300
      %v302 = vrot.slane %v301, 2
      %v303 = vadd.f32 %v301, %v302
      %v304 = vrot.slane %v303, 1
      %v305 = vadd.f32 %v303, %v304
      %v306 = vsel %vm234, %v292, 0.0
      %v307 = vrot.slane %v306, 4
      %v308 = vadd.f32 %v306, %v307
      %v309 = vrot.slane %v308, 2
      %v310 = vadd.f32 %v308, %v309
      %v311 = vrot.slane %v310, 1
      %v312 = vadd.f32 %v310, %v311
      %v313 = vsel %vm234, %v295, 0.0
      %v314 = vrot.slane %v313, 4
      %v315 = vadd.f32 %v313, %v314
      %v316 = vrot.slane %v315, 2
      %v317 = vadd.f32 %v315, %v316
      %v318 = vrot.slane %v317, 1
      %v319 = vadd.f32 %v317, %v318
      %v320 = vsel %vm234, %v298, 0.0
      %v321 = vrot.slane %v320, 4
      %v322 = vadd.f32 %v320, %v321
      %v323 = vrot.slane %v322, 2
      %v324 = vadd.f32 %v322, %v323
      %v325 = vrot.slane %v324, 1
      %v326 = vadd.f32 %v324, %v325
      %v327 = vmul.f32 %v305, 0.00390625
      %v328 = vmul.f32 %v312, 0.00390625
      %v329 = vmul.f32 %v319, 0.00390625
      %v330 = vmul.f32 %v326, 0.00390625
      %v331 = vadd.f32 %v327, 1e-08
      %v332 = vadd.f32 %v328, 1e-08
      %v333 = vadd.f32 %v329, 1e-08
      %v334 = vadd.f32 %v330, 1e-08
      %v335 = vrsqrt.pop %v331
      %v336 = vrsqrt.pop %v332
      %v337 = vrsqrt.pop %v333
      %v338 = vrsqrt.pop %v334
      %v339 = vmul.f32 %v279, %v335
      %v340 = vmul.f32 %v280, %v336
      %v341 = vmul.f32 %v281, %v337
      %v342 = vmul.f32 %v282, %v338
      %v343 = vld [vmem:[%s204] sm:$0x3]
      %v344 = vld [vmem:[%s204 + $0x2] sm:$0x3]
      %v345 = vld [vmem:[%s204 + $0x4] sm:$0x3]
      %v346 = vld [vmem:[%s204 + $0x6] sm:$0x3]
      %v347 = vld [vmem:[%s210] sm:$0x3]
      %v348 = vld [vmem:[%s210 + $0x2] sm:$0x3]
      %v349 = vld [vmem:[%s210 + $0x4] sm:$0x3]
      %v350 = vld [vmem:[%s210 + $0x6] sm:$0x3]
      %355 = vrot.lane.b32.xlu0 %v343, 16
      %v356 = vpop.permute.xlu0 %355
      %357 = vrot.lane.b32.xlu0 %v344, 16
      %v358 = vpop.permute.xlu0 %357
      %359 = vrot.lane.b32.xlu0 %v345, 16
      %v360 = vpop.permute.xlu0 %359
      %361 = vrot.lane.b32.xlu0 %v346, 16
      %v362 = vpop.permute.xlu0 %361
      %367 = vrot.lane.b32.xlu0 %v343, 32
      %v368 = vpop.permute.xlu0 %367
      %369 = vrot.lane.b32.xlu0 %v344, 32
      %v370 = vpop.permute.xlu0 %369
      %371 = vrot.lane.b32.xlu0 %v345, 32
      %v372 = vpop.permute.xlu0 %371
      %373 = vrot.lane.b32.xlu0 %v346, 32
      %v374 = vpop.permute.xlu0 %373
      %379 = vrot.lane.b32.xlu0 %v343, 48
      %v380 = vpop.permute.xlu0 %379
      %381 = vrot.lane.b32.xlu0 %v344, 48
      %v382 = vpop.permute.xlu0 %381
      %383 = vrot.lane.b32.xlu0 %v345, 48
      %v384 = vpop.permute.xlu0 %383
      %385 = vrot.lane.b32.xlu0 %v346, 48
      %v386 = vpop.permute.xlu0 %385
      %391 = vrot.lane.b32.xlu0 %v343, 64
      %v392 = vpop.permute.xlu0 %391
      %393 = vrot.lane.b32.xlu0 %v344, 64
      %v394 = vpop.permute.xlu0 %393
      %395 = vrot.lane.b32.xlu0 %v345, 64
      %v396 = vpop.permute.xlu0 %395
      %397 = vrot.lane.b32.xlu0 %v346, 64
      %v398 = vpop.permute.xlu0 %397
      %403 = vrot.lane.b32.xlu0 %v343, 80
      %v404 = vpop.permute.xlu0 %403
      %405 = vrot.lane.b32.xlu0 %v344, 80
      %v406 = vpop.permute.xlu0 %405
      %407 = vrot.lane.b32.xlu0 %v345, 80
      %v408 = vpop.permute.xlu0 %407
      %409 = vrot.lane.b32.xlu0 %v346, 80
      %v410 = vpop.permute.xlu0 %409
      %415 = vrot.lane.b32.xlu0 %v343, 96
      %v416 = vpop.permute.xlu0 %415
      %417 = vrot.lane.b32.xlu0 %v344, 96
      %v418 = vpop.permute.xlu0 %417
      %419 = vrot.lane.b32.xlu0 %v345, 96
      %v420 = vpop.permute.xlu0 %419
      %421 = vrot.lane.b32.xlu0 %v346, 96
      %v422 = vpop.permute.xlu0 %421
      %427 = vrot.lane.b32.xlu0 %v343, 112
      %v428 = vpop.permute.xlu0 %427
      %429 = vrot.lane.b32.xlu0 %v344, 112
      %v430 = vpop.permute.xlu0 %429
      %431 = vrot.lane.b32.xlu0 %v345, 112
      %v432 = vpop.permute.xlu0 %431
      %433 = vrot.lane.b32.xlu0 %v346, 112
      %v434 = vpop.permute.xlu0 %433
      %vm439 = vcmask 130048
      %v440 = vsel %vm439, %v343, %v356
      %v441 = vsel %vm439, %v344, %v358
      %v442 = vsel %vm439, %v345, %v360
      %v443 = vsel %vm439, %v346, %v362
      %vm444 = vcmask 261120
      %v445 = vsel %vm444, %v440, %v368
      %v446 = vsel %vm444, %v441, %v370
      %v447 = vsel %vm444, %v442, %v372
      %v448 = vsel %vm444, %v443, %v374
      %vm449 = vcmask 392192
      %v450 = vsel %vm449, %v445, %v380
      %v451 = vsel %vm449, %v446, %v382
      %v452 = vsel %vm449, %v447, %v384
      %v453 = vsel %vm449, %v448, %v386
      %vm454 = vcmask 523264
      %v455 = vsel %vm454, %v450, %v392
      %v456 = vsel %vm454, %v451, %v394
      %v457 = vsel %vm454, %v452, %v396
      %v458 = vsel %vm454, %v453, %v398
      %vm459 = vcmask 654336
      %v460 = vsel %vm459, %v455, %v404
      %v461 = vsel %vm459, %v456, %v406
      %v462 = vsel %vm459, %v457, %v408
      %v463 = vsel %vm459, %v458, %v410
      %vm464 = vcmask 785408
      %v465 = vsel %vm464, %v460, %v416
      %v466 = vsel %vm464, %v461, %v418
      %v467 = vsel %vm464, %v462, %v420
      %v468 = vsel %vm464, %v463, %v422
      %vm469 = vcmask 916480
      %v470 = vsel %vm469, %v465, %v428
      %v471 = vsel %vm469, %v466, %v430
      %v472 = vsel %vm469, %v467, %v432
      %v473 = vsel %vm469, %v468, %v434
      %478 = vrot.lane.b32.xlu0 %v347, 16
      %v479 = vpop.permute.xlu0 %478
      %480 = vrot.lane.b32.xlu0 %v348, 16
      %v481 = vpop.permute.xlu0 %480
      %482 = vrot.lane.b32.xlu0 %v349, 16
      %v483 = vpop.permute.xlu0 %482
      %484 = vrot.lane.b32.xlu0 %v350, 16
      %v485 = vpop.permute.xlu0 %484
      %490 = vrot.lane.b32.xlu0 %v347, 32
      %v491 = vpop.permute.xlu0 %490
      %492 = vrot.lane.b32.xlu0 %v348, 32
      %v493 = vpop.permute.xlu0 %492
      %494 = vrot.lane.b32.xlu0 %v349, 32
      %v495 = vpop.permute.xlu0 %494
      %496 = vrot.lane.b32.xlu0 %v350, 32
      %v497 = vpop.permute.xlu0 %496
      %502 = vrot.lane.b32.xlu0 %v347, 48
      %v503 = vpop.permute.xlu0 %502
      %504 = vrot.lane.b32.xlu0 %v348, 48
      %v505 = vpop.permute.xlu0 %504
      %506 = vrot.lane.b32.xlu0 %v349, 48
      %v507 = vpop.permute.xlu0 %506
      %508 = vrot.lane.b32.xlu0 %v350, 48
      %v509 = vpop.permute.xlu0 %508
      %514 = vrot.lane.b32.xlu0 %v347, 64
      %v515 = vpop.permute.xlu0 %514
      %516 = vrot.lane.b32.xlu0 %v348, 64
      %v517 = vpop.permute.xlu0 %516
      %518 = vrot.lane.b32.xlu0 %v349, 64
      %v519 = vpop.permute.xlu0 %518
      %520 = vrot.lane.b32.xlu0 %v350, 64
      %v521 = vpop.permute.xlu0 %520
      %526 = vrot.lane.b32.xlu0 %v347, 80
      %v527 = vpop.permute.xlu0 %526
      %528 = vrot.lane.b32.xlu0 %v348, 80
      %v529 = vpop.permute.xlu0 %528
      %530 = vrot.lane.b32.xlu0 %v349, 80
      %v531 = vpop.permute.xlu0 %530
      %532 = vrot.lane.b32.xlu0 %v350, 80
      %v533 = vpop.permute.xlu0 %532
      %538 = vrot.lane.b32.xlu0 %v347, 96
      %v539 = vpop.permute.xlu0 %538
      %540 = vrot.lane.b32.xlu0 %v348, 96
      %v541 = vpop.permute.xlu0 %540
      %542 = vrot.lane.b32.xlu0 %v349, 96
      %v543 = vpop.permute.xlu0 %542
      %544 = vrot.lane.b32.xlu0 %v350, 96
      %v545 = vpop.permute.xlu0 %544
      %550 = vrot.lane.b32.xlu0 %v347, 112
      %v551 = vpop.permute.xlu0 %550
      %552 = vrot.lane.b32.xlu0 %v348, 112
      %v553 = vpop.permute.xlu0 %552
      %554 = vrot.lane.b32.xlu0 %v349, 112
      %v555 = vpop.permute.xlu0 %554
      %556 = vrot.lane.b32.xlu0 %v350, 112
      %v557 = vpop.permute.xlu0 %556
      %v562 = vsel %vm439, %v347, %v479
      %v563 = vsel %vm439, %v348, %v481
      %v564 = vsel %vm439, %v349, %v483
      %v565 = vsel %vm439, %v350, %v485
      %v566 = vsel %vm444, %v562, %v491
      %v567 = vsel %vm444, %v563, %v493
      %v568 = vsel %vm444, %v564, %v495
      %v569 = vsel %vm444, %v565, %v497
      %v570 = vsel %vm449, %v566, %v503
      %v571 = vsel %vm449, %v567, %v505
      %v572 = vsel %vm449, %v568, %v507
      %v573 = vsel %vm449, %v569, %v509
      %v574 = vsel %vm454, %v570, %v515
      %v575 = vsel %vm454, %v571, %v517
      %v576 = vsel %vm454, %v572, %v519
      %v577 = vsel %vm454, %v573, %v521
      %v578 = vsel %vm459, %v574, %v527
      %v579 = vsel %vm459, %v575, %v529
      %v580 = vsel %vm459, %v576, %v531
      %v581 = vsel %vm459, %v577, %v533
      %v582 = vsel %vm464, %v578, %v539
      %v583 = vsel %vm464, %v579, %v541
      %v584 = vsel %vm464, %v580, %v543
      %v585 = vsel %vm464, %v581, %v545
      %v586 = vsel %vm469, %v582, %v551
      %v587 = vsel %vm469, %v583, %v553
      %v588 = vsel %vm469, %v584, %v555
      %v589 = vsel %vm469, %v585, %v557
      %v590 = vadd.f32 %v470, 1.0
      %v591 = vadd.f32 %v471, 1.0
      %v592 = vadd.f32 %v472, 1.0
      %v593 = vadd.f32 %v473, 1.0
      %v594 = vmul.f32 %v339, %v590
      %v595 = vmul.f32 %v340, %v591
      %v596 = vmul.f32 %v341, %v592
      %v597 = vmul.f32 %v342, %v593
      %v598 = vadd.f32 %v594, %v586
      %v599 = vadd.f32 %v595, %v587
      %v600 = vadd.f32 %v596, %v588
      %v601 = vadd.f32 %v597, %v589
      %602 = vst [vmem:[%s216] sm:$0x3] %v598
      %603 = vst [vmem:[%s216 + $0x2] sm:$0x3] %v599
      %604 = vst [vmem:[%s216 + $0x4] sm:$0x3] %v600
      %605 = vst [vmem:[%s216 + $0x6] sm:$0x3] %v601
      %s606 = smul.u32 4, %s14
      %p607 = scmp.lt.s32.totalorder %s606, 7
      %s608 = scalar_select %p607, %s606, 7
      %s609 = smul.addr %s608, 2
      %s610 = scalar_lea.vmem %s3, %s609
      // Predicated region
      $region33: #{_lambda_.1} parent=31 // pred_check
        %p611 = pneg %p110
      $region34: #{_lambda_.1} parent=31 // pred_check_branch
        %613 = sbr.rel (%p611) target = $region36
      $region35: #{_lambda_.1} parent=31 // pred_region
        %s614 = smul.u32 4, %s14
      $region36: #{_lambda_.1} parent=31 // pred_fallthru
        _
    $region32: #{_lambda_.1} parent=5 // pred_fallthru
      _
    %p615 = scmp.le.s32.totalorder 2, %s9
    // Predicated region
    $region37: #{_lambda_.1} parent=5 // pred_check
      %p616 = pneg %p615
    $region38: #{_lambda_.1} parent=5 // pred_check_branch
      %618 = sbr.rel (%p616) target = $region40
    $region39: #{_lambda_.1} parent=5 // pred_region
      %s619 = ssub.s32 %s9, 2
      // Predicated region
      $region41: #{_lambda_.1} parent=39 // pred_check
        %p620 = pneg %p116
      $region42: #{_lambda_.1} parent=39 // pred_check_branch
        %622 = sbr.rel (%p620) target = $region44
      $region43: #{_lambda_.1} parent=39 // pred_region
        %s623 = smul.u32 4, %s15
        %p624 = scmp.lt.s32.totalorder %s623, 7
        %s625 = scalar_select %p624, %s623, 7
        %s626 = smul.addr %s625, 2
        %s627 = scalar_lea.vmem %s3, %s626
      $region44: #{_lambda_.1} parent=39 // pred_fallthru
        _
    $region40: #{_lambda_.1} parent=5 // pred_fallthru
      _
  $region6: #{_lambda_.1} parent=0 // loop_footer
    %s13 = sadd.s32 1, %s9
  $region7: #{_lambda_.1} parent=0 // loop_footer_branch
    %8 = sbr.rel target = $region3
  $region8: #{_lambda_.1} parent=0 // loop_exit
    _

</llo_original>
